<compile_context>
chip_gen: v7x
topology: tpu7x:2x2x1
jax: 0.10.0
libtpu: 0.0.40
codegen_flags: <defaults>
</compile_context>

<pallas_src>
import jax
import jax.numpy as jnp
from jax.experimental import pallas as pl
from jax.experimental.pallas import tpu as pltpu


def _round_up(n, m):
    return ((n + m - 1) // m) * m


# ---------------------------------------------------------------------------
# Tile-size / VMEM heuristics
# ---------------------------------------------------------------------------
_TILE_BYTES_TARGET = 4 << 20   # ~4 MiB of streamed bytes (x + label + out) per grid step
_MIN_SPLIT = 2048              # above this batch, force >= 2 grid steps (v7x: 2 TCs)


def _choose_tile(batch, bytes_per_row, align):
    """Pick a batch tile: big enough to amortize per-step overhead, aligned,
    and guaranteeing >= 2 grid steps for large batches (v7x megacore)."""
    cap = max(align, (_TILE_BYTES_TARGET // bytes_per_row) // align * align)
    if batch <= cap:
        if batch >= _MIN_SPLIT:
            return _round_up((batch + 1) // 2, align)   # 2 steps -> both TCs busy on v7x
        return _round_up(batch, align)
    return cap


def _vmem_limit(tb, d, l):
    """Explicit scoped-VMEM request: double-buffered streams + resident weights."""
    stream = 2 * 4 * tb * (d + 1) + 2 * 4 * tb * l      # x+label in, out, x2 buffers
    weights = 4 * (d * l + 2 * l)
    need = stream + weights + (2 << 20)                 # headroom
    # >= the v5e 16 MiB default so large tiles always fit; << v7x 64 MiB physical.
    return int(min(max(need, 16 << 20), 48 << 20))


# ---------------------------------------------------------------------------
# Weight preparation (hoist out of the hot path; call once per set of weights)
# ---------------------------------------------------------------------------
def prepare_row_major_params(w_emb, w1, b1, input_dim):
    """Returns (wx_t [D,L], w_comb [1,L], b [1,L]) for encoder_forward."""
    d = input_dim
    l = w1.shape[0]
    wx_t = w1[:, :d].T.astype(jnp.float32)                                    # [D, L]
    w_comb = (w1[:, d:].astype(jnp.float32) @ w_emb.astype(jnp.float32)).T    # [1, L]
    b = b1.reshape(1, l).astype(jnp.float32)                                  # [1, L]
    return wx_t, w_comb, b


def prepare_feature_major_params(w_emb, w1, b1, input_dim):
    """Returns (wx [L,D], w_comb [L,1], b [L,1]) for encoder_forward_feature_major."""
    d = input_dim
    l = w1.shape[0]
    wx = w1[:, :d].astype(jnp.float32)                                        # [L, D]
    w_comb = w1[:, d:].astype(jnp.float32) @ w_emb.astype(jnp.float32)        # [L, 1]
    b = b1.reshape(l, 1).astype(jnp.float32)                                  # [L, 1]
    return wx, w_comb, b


# ---------------------------------------------------------------------------
# Kernel 1: row-major (PyTorch layout) — x: [B, D], out: [B, L]
# ---------------------------------------------------------------------------
def encoder_kernel(x_ref, label_ref, wx_t_ref, wcomb_ref, b_ref, o_ref):
    # x_ref: [TB, D]  label_ref: [TB, 1]  wx_t_ref: [D, L]  wcomb_ref: [1, L]  b_ref: [1, L]
    hx = jnp.dot(x_ref[...].astype(jnp.float32), wx_t_ref[...],
                 preferred_element_type=jnp.float32)                 # [TB, L]  (MXU)
    hl = jnp.dot(label_ref[...].astype(jnp.float32), wcomb_ref[...],
                 preferred_element_type=jnp.float32)                 # [TB, L]  (MXU, K=1)
    o_ref[...] = (hx + hl + b_ref[...]).astype(o_ref.dtype)


def encoder_forward(x, label, params_rm, *, tb=None, out_dtype=jnp.float32):
    """EncoderModel forward, row-major I/O (compatibility path).

    x:         [B, D]  (f32 or bf16; cast to f32 inside the kernel)
    label:     [B, 1]
    params_rm: output of prepare_row_major_params(...)
    """
    wx_t, w_comb, b = params_rm
    batch, d = x.shape
    l = wx_t.shape[1]

    if tb is None:
        tb = _choose_tile(batch, 4 * (d + 1 + l), 8)
    b_pad = _round_up(batch, tb)
    if b_pad != batch:
        x = jnp.pad(x, ((0, b_pad - batch), (0, 0)))
        label = jnp.pad(label, ((0, b_pad - batch), (0, 0)))

    out = pl.pallas_call(
        encoder_kernel,
        out_shape=jax.ShapeDtypeStruct((b_pad, l), out_dtype),
        grid_spec=pltpu.PrefetchScalarGridSpec(
            num_scalar_prefetch=0,
            grid=(b_pad // tb,),
            in_specs=[
                pl.BlockSpec((tb, d), lambda i: (i, 0)),   # x tile (streams)
                pl.BlockSpec((tb, 1), lambda i: (i, 0)),   # label tile (streams)
                pl.BlockSpec((d, l), lambda i: (0, 0)),    # W1_x.T (resident)
                pl.BlockSpec((1, l), lambda i: (0, 0)),    # folded label weights (resident)
                pl.BlockSpec((1, l), lambda i: (0, 0)),    # bias (resident)
            ],
            out_specs=pl.BlockSpec((tb, l), lambda i: (i, 0)),
        ),
        compiler_params=pltpu.CompilerParams(
            dimension_semantics=("parallel",),
            vmem_limit_bytes=_vmem_limit(tb, d, l)),
    )(x, label, wx_t, w_comb, b)
    return out[:batch] if b_pad != batch else out


# ---------------------------------------------------------------------------
# Kernel 2: lane-dense feature-major layout (preferred when the caller can
# supply x as [D, B] and consume [L, B]): batch sits on the 128-wide lane axis,
# so the x stream and output stores are unmasked, full-lane vector accesses.
# ---------------------------------------------------------------------------
def encoder_kernel_fm(xt_ref, label_ref, wx_ref, wcomb_ref, b_ref, ot_ref):
    # xt_ref: [D, TB]  label_ref: [1, TB]  wx_ref: [L, D]  wcomb_ref: [L, 1]  b_ref: [L, 1]
    hx = jnp.dot(wx_ref[...], xt_ref[...].astype(jnp.float32),
                 preferred_element_type=jnp.float32)                 # [L, TB]  (MXU)
    hl = jnp.dot(wcomb_ref[...], label_ref[...].astype(jnp.float32),
                 preferred_element_type=jnp.float32)                 # [L, TB]  (MXU, K=1)
    ot_ref[...] = (hx + hl + b_ref[...]).astype(ot_ref.dtype)


def encoder_forward_feature_major(x_t, label_row, params_fm, *, tb=None,
                                  out_dtype=jnp.float32):
    """Lane-dense variant. x_t: [D, B], label_row: [1, B] -> returns [L, B]."""
    wx, w_comb, b = params_fm
    d, batch = x_t.shape
    l = wx.shape[0]

    if tb is None:
        tb = _choose_tile(batch, 4 * (d + 1 + l), 128)
    b_pad = _round_up(batch, tb)
    if b_pad != batch:
        x_t = jnp.pad(x_t, ((0, 0), (0, b_pad - batch)))
        label_row = jnp.pad(label_row, ((0, 0), (0, b_pad - batch)))

    out_t = pl.pallas_call(
        encoder_kernel_fm,
        out_shape=jax.ShapeDtypeStruct((l, b_pad), out_dtype),
        grid_spec=pltpu.PrefetchScalarGridSpec(
            num_scalar_prefetch=0,
            grid=(b_pad // tb,),
            in_specs=[
                pl.BlockSpec((d, tb), lambda i: (0, i)),   # x.T tile (lane-dense)
                pl.BlockSpec((1, tb), lambda i: (0, i)),   # label row tile (lane-dense)
                pl.BlockSpec((l, d), lambda i: (0, 0)),    # W1_x (resident)
                pl.BlockSpec((l, 1), lambda i: (0, 0)),    # folded label weights (resident)
                pl.BlockSpec((l, 1), lambda i: (0, 0)),    # bias (resident)
            ],
            out_specs=pl.BlockSpec((l, tb), lambda i: (0, i)),
        ),
        compiler_params=pltpu.CompilerParams(
            dimension_semantics=("parallel",),
            vmem_limit_bytes=_vmem_limit(tb, d, l)),
    )(x_t, label_row, wx, w_comb, b)
    return out_t[:, :batch] if b_pad != batch else out_t


# Convenience wrappers that prep weights inline (use the prepare_* functions
# directly when calling repeatedly with the same weights).
def encoder_forward_from_weights(x, label, w_emb, w1, b1, **kw):
    return encoder_forward(x, label,
                           prepare_row_major_params(w_emb, w1, b1, x.shape[1]), **kw)


# ---------------------------------------------------------------------------
# Pure-JAX reference matching the PyTorch forward exactly.
# ---------------------------------------------------------------------------
def encoder_forward_ref(x, label, w_emb, w1, b1):
    label_emb = label @ w_emb.T                                     # [B, E]
    h = jnp.concatenate([x, label_emb], axis=1).astype(jnp.float32)
    return h @ w1.T + b1


if __name__ == "__main__":
    # Shapes consistent with the module: input_dim=32, label_emb_dim=16,
    # latent_dim=32, batch=8.
    B, D, E, L = 8, 32, 16, 32

    key = jax.random.PRNGKey(0)
    kx, kl, kwe, kw1, kb1 = jax.random.split(key, 5)

    x = jax.random.normal(kx, (B, D), dtype=jnp.float32)
    label = jax.random.normal(kl, (B, 1), dtype=jnp.float32)
    w_emb = jax.random.normal(kwe, (E, 1), dtype=jnp.float32) * 0.1   # Linear(1, E, bias=False)
    w1 = jax.random.normal(kw1, (L, D + E), dtype=jnp.float32) * 0.1  # Linear(D+E, L)
    b1 = jax.random.normal(kb1, (L,), dtype=jnp.float32) * 0.1

    # Hoisted weight prep (done once).
    params_rm = prepare_row_major_params(w_emb, w1, b1, D)
    params_fm = prepare_feature_major_params(w_emb, w1, b1, D)

    ref = encoder_forward_ref(x, label, w_emb, w1, b1)

    # Row-major kernel (PyTorch I/O layout).
    out = jax.block_until_ready(encoder_forward(x, label, params_rm))
    assert out.shape == (B, L)
    assert jnp.allclose(out, ref, atol=1e-5, rtol=1e-5), "row-major kernel mismatch"

    # Lane-dense (feature-major) kernel.
    out_t = jax.block_until_ready(
        encoder_forward_feature_major(x.T, label.T, params_fm))
    assert out_t.shape == (L, B)
    assert jnp.allclose(out_t.T, ref, atol=1e-5, rtol=1e-5), "feature-major kernel mismatch"

    # Ragged / multi-step-grid path: exercises padding, tiling, pipelining,
    # and the >=2-grid-step (megacore) branch via explicit tb.
    B2 = 520
    k2x, k2l = jax.random.split(jax.random.PRNGKey(1))
    x2 = jax.random.normal(k2x, (B2, D), dtype=jnp.float32)
    label2 = jax.random.normal(k2l, (B2, 1), dtype=jnp.float32)
    ref2 = encoder_forward_ref(x2, label2, w_emb, w1, b1)

    out2 = jax.block_until_ready(encoder_forward(x2, label2, params_rm, tb=256))
    assert out2.shape == (B2, L)
    assert jnp.allclose(out2, ref2, atol=1e-4, rtol=1e-5), "tiled row-major kernel mismatch"

    out2_t = jax.block_until_ready(
        encoder_forward_feature_major(x2.T, label2.T, params_fm, tb=256))
    assert out2_t.shape == (L, B2)
    assert jnp.allclose(out2_t.T, ref2, atol=1e-4, rtol=1e-5), "tiled feature-major kernel mismatch"

    # bf16 activation streaming path (kernel casts to f32, matching .float()).
    x2_bf = x2.astype(jnp.bfloat16)
    label2_bf = label2.astype(jnp.bfloat16)
    ref2_bf = encoder_forward_ref(x2_bf.astype(jnp.float32),
                                  label2_bf.astype(jnp.float32), w_emb, w1, b1)
    out2_bf = jax.block_until_ready(encoder_forward(x2_bf, label2_bf, params_rm))
    assert jnp.allclose(out2_bf, ref2_bf, atol=1e-4, rtol=1e-4), "bf16-stream kernel mismatch"

    print("KERNEL_OK")
</pallas_src>

<mosaic_0001>
module attributes {stable_mosaic.version = 11 : i64} {
  func.func @encoder_kernel(%arg0: i32, %arg1: memref<8x32xf32, #tpu.memory_space<vmem>>, %arg2: memref<8x1xf32, #tpu.memory_space<vmem>>, %arg3: memref<32x32xf32, #tpu.memory_space<vmem>>, %arg4: memref<1x32xf32, #tpu.memory_space<vmem>>, %arg5: memref<1x32xf32, #tpu.memory_space<vmem>>, %arg6: memref<8x32xf32, #tpu.memory_space<vmem>>) attributes {dimension_semantics = [#tpu.dimension_semantics<parallel>], iteration_bounds = array<i64: 1>, scalar_prefetch = 0 : i64, scratch_operands = 0 : i64, tpu.core_type = #tpu.core_type<tc>, window_params = [{transform_indices = @transform_0, window_bounds = array<i64: 8, 32>}, {transform_indices = @transform_1, window_bounds = array<i64: 8, 1>}, {pipeline_mode = #tpu.pipeline_mode<synchronous>, transform_indices = @transform_2, window_bounds = array<i64: 32, 32>}, {pipeline_mode = #tpu.pipeline_mode<synchronous>, transform_indices = @transform_3, window_bounds = array<i64: 1, 32>}, {pipeline_mode = #tpu.pipeline_mode<synchronous>, transform_indices = @transform_4, window_bounds = array<i64: 1, 32>}, {transform_indices = @transform_5, window_bounds = array<i64: 8, 32>}]} {
    %c0 = arith.constant 0 : index
    %c0_0 = arith.constant 0 : index
    %0 = vector.load %arg1[%c0, %c0_0] : memref<8x32xf32, #tpu.memory_space<vmem>>, vector<8x32xf32>
    %c0_1 = arith.constant 0 : index
    %c0_2 = arith.constant 0 : index
    %1 = vector.load %arg3[%c0_1, %c0_2] : memref<32x32xf32, #tpu.memory_space<vmem>>, vector<32x32xf32>
    %cst = arith.constant dense<0.000000e+00> : vector<8x32xf32>
    %2 = tpu.matmul %0, %1, %cst {dimension_numbers = #tpu.dot_dimension_numbers<[1], [0], [0], [1], [0, 0, 1, 1], [], []>} : vector<8x32xf32>, vector<32x32xf32>, vector<8x32xf32> -> vector<8x32xf32>
    %c0_3 = arith.constant 0 : index
    %c0_4 = arith.constant 0 : index
    %3 = vector.load %arg2[%c0_3, %c0_4] : memref<8x1xf32, #tpu.memory_space<vmem>>, vector<8x1xf32>
    %c0_5 = arith.constant 0 : index
    %c0_6 = arith.constant 0 : index
    %4 = vector.load %arg4[%c0_5, %c0_6] : memref<1x32xf32, #tpu.memory_space<vmem>>, vector<1x32xf32>
    %cst_7 = arith.constant dense<0.000000e+00> : vector<8x32xf32>
    %5 = tpu.matmul %3, %4, %cst_7 {dimension_numbers = #tpu.dot_dimension_numbers<[1], [0], [0], [1], [0, 0, 1, 1], [], []>} : vector<8x1xf32>, vector<1x32xf32>, vector<8x32xf32> -> vector<8x32xf32>
    %6 = arith.addf %2, %5 : vector<8x32xf32>
    %c0_8 = arith.constant 0 : index
    %c0_9 = arith.constant 0 : index
    %7 = vector.load %arg5[%c0_8, %c0_9] : memref<1x32xf32, #tpu.memory_space<vmem>>, vector<1x32xf32>
    %8 = vector.broadcast %7 : vector<1x32xf32> to vector<8x32xf32>
    %9 = arith.addf %6, %8 : vector<8x32xf32>
    %c0_10 = arith.constant 0 : index
    %c0_11 = arith.constant 0 : index
    %10 = vector.load %arg6[%c0_10, %c0_11] : memref<8x32xf32, #tpu.memory_space<vmem>>, vector<8x32xf32>
    tpu.vector_store %arg6[%c0_10, %c0_11], %9 {strides = array<i32>} : memref<8x32xf32, #tpu.memory_space<vmem>>, vector<8x32xf32>,
    return
  }
  func.func @transform_0(%arg0: i32) -> (i32, i32) {
    %c0_i32 = arith.constant 0 : i32
    %c0_i32_0 = arith.constant 0 : i32
    return %arg0, %c0_i32 : i32, i32
  }
  func.func @transform_1(%arg0: i32) -> (i32, i32) {
    %c0_i32 = arith.constant 0 : i32
    %c0_i32_0 = arith.constant 0 : i32
    return %arg0, %c0_i32 : i32, i32
  }
  func.func @transform_2(%arg0: i32) -> (i32, i32) {
    %c0_i32 = arith.constant 0 : i32
    %c0_i32_0 = arith.constant 0 : i32
    %c0_i32_1 = arith.constant 0 : i32
    return %c0_i32, %c0_i32_0 : i32, i32
  }
  func.func @transform_3(%arg0: i32) -> (i32, i32) {
    %c0_i32 = arith.constant 0 : i32
    %c0_i32_0 = arith.constant 0 : i32
    %c0_i32_1 = arith.constant 0 : i32
    return %c0_i32, %c0_i32_0 : i32, i32
  }
  func.func @transform_4(%arg0: i32) -> (i32, i32) {
    %c0_i32 = arith.constant 0 : i32
    %c0_i32_0 = arith.constant 0 : i32
    %c0_i32_1 = arith.constant 0 : i32
    return %c0_i32, %c0_i32_0 : i32, i32
  }
  func.func @transform_5(%arg0: i32) -> (i32, i32) {
    %c0_i32 = arith.constant 0 : i32
    %c0_i32_0 = arith.constant 0 : i32
    return %arg0, %c0_i32 : i32, i32
  }
}

</mosaic_0001>

<llo_original>
// kernel: tpu_custom_call.1
$region0: #{tpu_custom_call.1}
  #allocation0 [shape = 'u32[]', space=smem, size = 0x4, offset = 0x4, fixed_abs, tag = 'smem constant byte address 0x4 - core index']
  #allocation1 [shape = 'u32[144,128]{1,0:T(1,128)}', space=vmem, size = 0x12000, scoped, tag = 'internal scratch']
  %s0 = inlined_call_operand.vmem [shape: f32[8,32], index: 0, kind: input, shape index: {}]
  %s1 = inlined_call_operand.vmem [shape: f32[8,1], index: 1, kind: input, shape index: {}]
  %s2 = inlined_call_operand.hbm [shape: f32[32,32], index: 2, kind: input, shape index: {}]
  %s3 = inlined_call_operand.vmem [shape: f32[1,32], index: 3, kind: input, shape index: {}]
  %s4 = inlined_call_operand.vmem [shape: f32[1,32], index: 4, kind: input, shape index: {}]
  %s5 = inlined_call_operand.hbm [shape: f32[8,32], index: 5, kind: output, shape index: {}]
  %s6 = sld [smem:[#allocation0]]
  $region34: #{tpu_custom_call.1} parent=0
    _
  %s8 = ssub.s32 1, %s6
  %s9 = scalar_select 0, %s8, %s6
  $region1: #{tpu_custom_call.1} parent=0
    #allocation2 [shape = 'u8[16384]{0}', space=vmem, size = 0x4000, scoped, tag = 'input window, operand 2, single buffered']
    #allocation3 [shape = 's32[1]{0}', space=sflag, size = 0x4, scoped, tag = 'scoped memory for tpu_custom_call.1']
    #allocation4 [shape = 's32[1]{0}', space=sflag, size = 0x4, scoped, tag = 'scoped memory for tpu_custom_call.1']
    #allocation5 [shape = 'u8[4096]{0}', space=vmem, size = 0x1000, scoped, tag = 'output window, operand 0, single buffered']
    %10 = vsyncpa [#allocation3], 0
    %11 = vsyncpa [#allocation4], 0
    // Predicated region
    $region2: #{tpu_custom_call.1} parent=1 // pred_check
      _
    $region3: #{tpu_custom_call.1} parent=1 // pred_check_branch
      %13 = sbr.rel (0) target = $region5
    $region4: #{tpu_custom_call.1} parent=1 // pred_region
      _
    $region5: #{tpu_custom_call.1} parent=1 // pred_fallthru
      _
    // Predicated region
    $region6: #{tpu_custom_call.1} parent=1 // pred_check
      _
    $region7: #{tpu_custom_call.1} parent=1 // pred_check_branch
      %15 = sbr.rel (0) target = $region9
    $region8: #{tpu_custom_call.1} parent=1 // pred_region
      _
    $region9: #{tpu_custom_call.1} parent=1 // pred_fallthru
      _
    // Predicated region
    $region10: #{tpu_custom_call.1} parent=1 // pred_check
      _
    $region11: #{tpu_custom_call.1} parent=1 // pred_check_branch
      %17 = sbr.rel (0) target = $region13
    $region12: #{tpu_custom_call.1} parent=1 // pred_region
      %s19 = ssub.s32 512, 512
      %20 = vsyncadd [#allocation3], %s19
      %s21 = sshll.u32 [#allocation2], 4
      %s22 = int_to_ptr.vmem [resolvable:$true] %s21
      %27 = dma.hbm_to_vmem [thread:$0]  %s2, 512, %s22, [#allocation3], 128, 128, 8
    $region13: #{tpu_custom_call.1} parent=1 // pred_fallthru
      _
    // Predicated region
    $region14: #{tpu_custom_call.1} parent=1 // pred_check
      _
    $region15: #{tpu_custom_call.1} parent=1 // pred_check_branch
      %29 = sbr.rel (0) target = $region17
    $region16: #{tpu_custom_call.1} parent=1 // pred_region
      _
    $region17: #{tpu_custom_call.1} parent=1 // pred_fallthru
      _
    // Predicated region
    $region18: #{tpu_custom_call.1} parent=1 // pred_check
      _
    $region19: #{tpu_custom_call.1} parent=1 // pred_check_branch
      %31 = sbr.rel (0) target = $region21
    $region20: #{tpu_custom_call.1} parent=1 // pred_region
      _
    $region21: #{tpu_custom_call.1} parent=1 // pred_fallthru
      _
    // Predicated region
    $region22: #{tpu_custom_call.1} parent=1 // pred_check
      _
    $region23: #{tpu_custom_call.1} parent=1 // pred_check_branch
      %33 = sbr.rel (0) target = $region25
    $region24: #{tpu_custom_call.1} parent=1 // pred_region
      %34 = dma.done [#allocation3], 512
    $region25: #{tpu_custom_call.1} parent=1 // pred_fallthru
      _
    %v35 = vld [vmem:[%s0] sm:$0xff]
    %v36 = vld [vmem:[#allocation2] sm:$0xff]
    %v37 = vld [vmem:[#allocation2 + $0x8] sm:$0xff]
    %v38 = vld [vmem:[#allocation2 + $0x10] sm:$0xff]
    %v39 = vld [vmem:[#allocation2 + $0x18] sm:$0xff]
    %v40 = vld [vmem:[%s1] sm:$0xff]
    %v41 = vld [vmem:[%s3] sm:$0x1]
    %vm42 = vcmask 7168
    %v44 = vsel %vm42, %v40, 0
    %vm46 = vcmask 1040384
    %v48 = vsel %vm46, %v41, 0
    %50 = vmatprep.subr.mxu0 0.0
    %51 = vmatpush1.msra.mxu0 %v48
    %52 = vmatprep.subr.mxu0 0.0
    %53 = vmatpush1.msra.mxu0 0.0
    %54 = vmatprep.subr.mxu0 0.0
    %55 = vmatpush1.msra.mxu0 0.0
    %56 = vmatprep.subr.mxu0 0.0
    %57 = vmatpush1.msra.mxu0 0.0
    %58 = vmatprep.subr.mxu0 0.0
    %59 = vmatpush1.msra.mxu0 0.0
    %60 = vmatprep.subr.mxu0 0.0
    %61 = vmatpush1.msra.mxu0 0.0
    %62 = vmatprep.subr.mxu0 0.0
    %63 = vmatpush1.msra.mxu0 0.0
    %64 = vmatprep.subr.mxu0 0.0
    %65 = vmatpush1.msra.mxu0 0.0
    %66 = vmatprep.subr.mxu0 0.0
    %67 = vmatpush1.msra.mxu0 0.0
    %68 = vmatprep.subr.mxu0 0.0
    %69 = vmatpush1.msra.mxu0 0.0
    %70 = vmatprep.subr.mxu0 0.0
    %71 = vmatpush1.msra.mxu0 0.0
    %72 = vmatprep.subr.mxu0 0.0
    %73 = vmatpush1.msra.mxu0 0.0
    %74 = vmatprep.subr.mxu0 0.0
    %75 = vmatpush1.msra.mxu0 0.0
    %76 = vmatprep.subr.mxu0 0.0
    %77 = vmatpush1.msra.mxu0 0.0
    %78 = vmatprep.subr.mxu0 0.0
    %79 = vmatpush1.msra.mxu0 0.0
    %80 = vmatprep.subr.mxu0 0.0
    %81 = vmatpush1.msra.mxu0 0.0
    %82 = vmatprep.subr.mxu0 0.0
    %83 = vmatpush1.msra.mxu0 0.0
    %84 = vmatprep.subr.mxu0 0.0
    %85 = vmatpush1.msra.mxu0 0.0
    %86 = vmatprep.subr.mxu0 0.0
    %87 = vmatpush1.msra.mxu0 0.0
    %88 = vmatprep.subr.mxu0 0.0
    %89 = vmatpush1.msra.mxu0 0.0
    %90 = vmatprep.subr.mxu0 0.0
    %91 = vmatpush1.msra.mxu0 0.0
    %92 = vmatprep.subr.mxu0 0.0
    %93 = vmatpush1.msra.mxu0 0.0
    %94 = vmatprep.subr.mxu0 0.0
    %95 = vmatpush1.msra.mxu0 0.0
    %96 = vmatprep.subr.mxu0 0.0
    %97 = vmatpush1.msra.mxu0 0.0
    %98 = vmatprep.subr.mxu0 0.0
    %99 = vmatpush1.msra.mxu0 0.0
    %100 = vmatprep.subr.mxu0 0.0
    %101 = vmatpush1.msra.mxu0 0.0
    %102 = vmatprep.subr.mxu0 0.0
    %103 = vmatpush1.msra.mxu0 0.0
    %104 = vmatprep.subr.mxu0 0.0
    %105 = vmatpush1.msra.mxu0 0.0
    %106 = vmatprep.subr.mxu0 0.0
    %107 = vmatpush1.msra.mxu0 0.0
    %108 = vmatprep.subr.mxu0 0.0
    %109 = vmatpush1.msra.mxu0 0.0
    %110 = vmatprep.subr.mxu0 0.0
    %111 = vmatpush1.msra.mxu0 0.0
    %112 = vmatprep.subr.mxu0 0.0
    %113 = vmatpush1.msra.mxu0 0.0
    %114 = vmatprep.mubr.f32.mxu0 0.0
    %115 = vmatmul.mubr.f32.gmra.mrb[0].mxu0 %v44
    %v116 = vpop.f32.mrb[0].mxu0
    %v117 = vadd.f32 0.0, %v116
    %v118 = vpop.f32.mrb[0].mxu0
    %119 = vdwg.mxu0
    %vm120 = vcmask 261120
    %v122 = vsel %vm120, %v35, 0
    %124 = vmatprep.subr.mxu0 0.0
    %125 = vmatpush1.msra.mxu0 %v36
    %126 = vmatprep.subr.mxu0 0.0
    %127 = vmatpush1.msra.mxu0 %v37
    %128 = vmatprep.subr.mxu0 0.0
    %129 = vmatpush1.msra.mxu0 %v38
    %130 = vmatprep.subr.mxu0 0.0
    %131 = vmatpush1.msra.mxu0 %v39
    %132 = vmatprep.subr.mxu0 0.0
    %133 = vmatpush1.msra.mxu0 0.0
    %134 = vmatprep.subr.mxu0 0.0
    %135 = vmatpush1.msra.mxu0 0.0
    %136 = vmatprep.subr.mxu0 0.0
    %137 = vmatpush1.msra.mxu0 0.0
    %138 = vmatprep.subr.mxu0 0.0
    %139 = vmatpush1.msra.mxu0 0.0
    %140 = vmatprep.subr.mxu0 0.0
    %141 = vmatpush1.msra.mxu0 0.0
    %142 = vmatprep.subr.mxu0 0.0
    %143 = vmatpush1.msra.mxu0 0.0
    %144 = vmatprep.subr.mxu0 0.0
    %145 = vmatpush1.msra.mxu0 0.0
    %146 = vmatprep.subr.mxu0 0.0
    %147 = vmatpush1.msra.mxu0 0.0
    %148 = vmatprep.subr.mxu0 0.0
    %149 = vmatpush1.msra.mxu0 0.0
    %150 = vmatprep.subr.mxu0 0.0
    %151 = vmatpush1.msra.mxu0 0.0
    %152 = vmatprep.subr.mxu0 0.0
    %153 = vmatpush1.msra.mxu0 0.0
    %154 = vmatprep.subr.mxu0 0.0
    %155 = vmatpush1.msra.mxu0 0.0
    %156 = vmatprep.subr.mxu0 0.0
    %157 = vmatpush1.msra.mxu0 0.0
    %158 = vmatprep.subr.mxu0 0.0
    %159 = vmatpush1.msra.mxu0 0.0
    %160 = vmatprep.subr.mxu0 0.0
    %161 = vmatpush1.msra.mxu0 0.0
    %162 = vmatprep.subr.mxu0 0.0
    %163 = vmatpush1.msra.mxu0 0.0
    %164 = vmatprep.subr.mxu0 0.0
    %165 = vmatpush1.msra.mxu0 0.0
    %166 = vmatprep.subr.mxu0 0.0
    %167 = vmatpush1.msra.mxu0 0.0
    %168 = vmatprep.subr.mxu0 0.0
    %169 = vmatpush1.msra.mxu0 0.0
    %170 = vmatprep.subr.mxu0 0.0
    %171 = vmatpush1.msra.mxu0 0.0
    %172 = vmatprep.subr.mxu0 0.0
    %173 = vmatpush1.msra.mxu0 0.0
    %174 = vmatprep.subr.mxu0 0.0
    %175 = vmatpush1.msra.mxu0 0.0
    %176 = vmatprep.subr.mxu0 0.0
    %177 = vmatpush1.msra.mxu0 0.0
    %178 = vmatprep.subr.mxu0 0.0
    %179 = vmatpush1.msra.mxu0 0.0
    %180 = vmatprep.subr.mxu0 0.0
    %181 = vmatpush1.msra.mxu0 0.0
    %182 = vmatprep.subr.mxu0 0.0
    %183 = vmatpush1.msra.mxu0 0.0
    %184 = vmatprep.subr.mxu0 0.0
    %185 = vmatpush1.msra.mxu0 0.0
    %186 = vmatprep.subr.mxu0 0.0
    %187 = vmatpush1.msra.mxu0 0.0
    %188 = vmatprep.mubr.f32.mxu0 0.0
    %189 = vmatmul.mubr.f32.gmra.mrb[0].mxu0 %v122
    %v190 = vpop.f32.mrb[0].mxu0
    %v191 = vadd.f32 %v117, %v190
    %v192 = vpop.f32.mrb[0].mxu0
    %193 = vdwg.mxu0
    %v194 = vld [vmem:[%s4] sm:$0x1]
    %v196 = vlaneseq
    %v197 = vshrl.u32 %v196, 7
    %v198 = vsub.s32 0, %v197
    %v199 = vrot.slane %v194, %v198
    %v201 = vadd.f32 %v191, %v199
    %202 = vst.msk [vmem:[#allocation5] sm:$0xff] %vm120, %v201
    // Predicated region
    $region26: #{tpu_custom_call.1} parent=1 // pred_check
      _
    $region27: #{tpu_custom_call.1} parent=1 // pred_check_branch
      %204 = sbr.rel (0) target = $region29
    $region28: #{tpu_custom_call.1} parent=1 // pred_region
      %s206 = ssub.s32 128, 128
      %207 = vsyncadd [#allocation4], %s206
      %s209 = sshll.u32 [#allocation5], 4
      %s210 = int_to_ptr.vmem [resolvable:$true] %s209
      %212 = dma.vmem_to_hbm [thread:$0]  %s210, 128, %s5, [#allocation4]
    $region29: #{tpu_custom_call.1} parent=1 // pred_fallthru
      _
    // Predicated region
    $region30: #{tpu_custom_call.1} parent=1 // pred_check
      _
    $region31: #{tpu_custom_call.1} parent=1 // pred_check_branch
      %214 = sbr.rel (0) target = $region33
    $region32: #{tpu_custom_call.1} parent=1 // pred_region
      %215 = dma.done [#allocation4], 128
    $region33: #{tpu_custom_call.1} parent=1 // pred_fallthru
      _
    %216 = vsyncpa [#allocation3], 1
    %217 = vsyncpa [#allocation4], 1

</llo_original>
